<compile_context>
chip_gen: v5e
topology: v5e:2x2
jax: 0.10.0
libtpu: 0.0.40
codegen_flags: <defaults>
</compile_context>

<pallas_src>
import functools

import jax
import jax.numpy as jnp
from jax import lax
from jax.experimental import pallas as pl
from jax.experimental.pallas import tpu as pltpu


def _lstm_cls_kernel(x_ref, wih_ref, whh_ref, b_ref, wout_ref, bout_ref,
                     out_ref, xg_ref, hs_ref, *, hidden_dim, seq_len):
    """Single-program kernel: full LSTM recurrence + fused output projection.

    x_ref    : (seq_len, embedding_dim)       VMEM
    wih_ref  : (embedding_dim, 4*hidden_dim)  VMEM  (input->gates, transposed)
    whh_ref  : (hidden_dim,    4*hidden_dim)  VMEM  (hidden->gates, transposed)
    b_ref    : (1, 4*hidden_dim)              VMEM  (b_ih + b_hh)
    wout_ref : (hidden_dim, out_pad)          VMEM  (hidden2tag weight, transposed, lane-padded)
    bout_ref : (1, out_pad)                   VMEM  (lane-padded)
    out_ref  : (seq_len, out_pad)             VMEM  (lane-dense class-score slab)
    xg_ref   : (seq_len, 4*hidden_dim)        VMEM scratch  (precomputed x@Wih + b)
    hs_ref   : (seq_len, hidden_dim)          VMEM scratch  (all hidden states)
    """
    H = hidden_dim

    whh = whh_ref[...]

    # Prologue: one batched matmul for the input projection of every timestep.
    xg_ref[...] = (jnp.dot(x_ref[...], wih_ref[...],
                           preferred_element_type=jnp.float32)
                   + b_ref[...])                                   # (S, 4H)

    def step(t, carry):
        h, c = carry                                               # each (1, H)
        # Only the serial recurrent matmul remains inside the loop.
        gates = (xg_ref[pl.ds(t, 1), :]
                 + jnp.dot(h, whh, preferred_element_type=jnp.float32))  # (1, 4H)
        # 2 full-vector EUP pushes instead of 4 sub-vector ones.
        sig = jax.nn.sigmoid(gates)
        th = jnp.tanh(gates)
        i_g = sig[:, 0 * H:1 * H]
        f_g = sig[:, 1 * H:2 * H]
        g_g = th[:, 2 * H:3 * H]
        o_g = sig[:, 3 * H:4 * H]
        c_new = f_g * c + i_g * g_g
        h_new = o_g * jnp.tanh(c_new)
        hs_ref[pl.ds(t, 1), :] = h_new
        return (h_new, c_new)

    h0 = jnp.zeros((1, H), jnp.float32)    # self.hidden = zeros (1, 1, H)
    c0 = jnp.zeros((1, H), jnp.float32)
    # seq_len is a static Python int -> fully unroll for LLO scheduling visibility.
    lax.fori_loop(0, seq_len, step, (h0, c0), unroll=True)

    # Epilogue: one batched hidden2tag projection + single lane-dense store.
    scores = (jnp.dot(hs_ref[...], wout_ref[...],
                      preferred_element_type=jnp.float32)
              + bout_ref[...])                                     # (S, out_pad)
    out_ref[...] = scores


def init_params(key, vocab_size, embedding_dim, hidden_dim, num_classes):
    """Deterministic synthetic parameters matching nn.Embedding / nn.LSTM / nn.Linear shapes."""
    ks = jax.random.split(key, 7)
    H, E = hidden_dim, embedding_dim
    num_tags = num_classes + 1
    s = 0.1
    return {
        "embedding": jax.random.normal(ks[0], (vocab_size, E), jnp.float32) * s,
        # PyTorch nn.LSTM layout: weight_ih_l0 (4H, E), weight_hh_l0 (4H, H), biases (4H,)
        "w_ih": jax.random.normal(ks[1], (4 * H, E), jnp.float32) * s,
        "w_hh": jax.random.normal(ks[2], (4 * H, H), jnp.float32) * s,
        "b_ih": jax.random.normal(ks[3], (4 * H,), jnp.float32) * s,
        "b_hh": jax.random.normal(ks[4], (4 * H,), jnp.float32) * s,
        # nn.Linear(hidden_dim, num_classes + 1): weight (num_tags, H), bias (num_tags,)
        "w_out": jax.random.normal(ks[5], (num_tags, H), jnp.float32) * s,
        "b_out": jax.random.normal(ks[6], (num_tags,), jnp.float32) * s,
    }


def lstm_classification_forward(sentence, params, hidden_dim):
    """Forward pass equivalent to LSTMClassification.forward (batch=1, zero initial hidden).

    sentence: int32 (seq_len,) token ids
    returns:  float32 (seq_len, num_tags) class scores
    """
    seq_len = sentence.shape[0]
    embedding = params["embedding"]
    E = embedding.shape[1]
    H = hidden_dim
    num_tags = params["w_out"].shape[0]
    out_pad = max(128, ((num_tags + 127) // 128) * 128)   # lane-dense output slab

    # Glue: embedding lookup (gather), weight transposition, lane padding.
    embeds = jnp.take(embedding, sentence, axis=0).astype(jnp.float32)   # (S, E)
    wih_t = params["w_ih"].T                                             # (E, 4H)
    whh_t = params["w_hh"].T                                             # (H, 4H)
    b = (params["b_ih"] + params["b_hh"]).reshape(1, 4 * H)              # (1, 4H)
    wout_p = jnp.zeros((H, out_pad), jnp.float32).at[:, :num_tags].set(
        params["w_out"].T)                                               # (H, out_pad)
    bout_p = jnp.zeros((1, out_pad), jnp.float32).at[:, :num_tags].set(
        params["b_out"].reshape(1, num_tags))                            # (1, out_pad)

    # NOTE: nn.LSTM(dropout=0.25) with num_layers=1 applies no dropout, so forward
    # semantics are deterministic.
    kernel = functools.partial(_lstm_cls_kernel, hidden_dim=H, seq_len=seq_len)

    full = lambda shape: pl.BlockSpec(shape, lambda i: (0, 0))
    scores_padded = pl.pallas_call(
        kernel,
        out_shape=jax.ShapeDtypeStruct((seq_len, out_pad), jnp.float32),
        grid=(1,),
        in_specs=[
            full((seq_len, E)),
            full((E, 4 * H)),
            full((H, 4 * H)),
            full((1, 4 * H)),
            full((H, out_pad)),
            full((1, out_pad)),
        ],
        out_specs=full((seq_len, out_pad)),
        scratch_shapes=[
            pltpu.VMEM((seq_len, 4 * H), jnp.float32),   # xg: precomputed input gates
            pltpu.VMEM((seq_len, H), jnp.float32),       # all hidden states
        ],
        compiler_params=pltpu.CompilerParams(
            dimension_semantics=("arbitrary",),
        ),
    )(embeds, wih_t, whh_t, b, wout_p, bout_p)
    return scores_padded[:, :num_tags]


def _reference_forward(sentence, params, hidden_dim):
    """Pure-JAX reference mirroring PyTorch LSTM semantics (for self-check)."""
    H = hidden_dim
    embeds = jnp.take(params["embedding"], sentence, axis=0)
    w_ih, w_hh = params["w_ih"], params["w_hh"]
    b = params["b_ih"] + params["b_hh"]

    def cell(carry, x_t):
        h, c = carry
        gates = x_t @ w_ih.T + h @ w_hh.T + b
        i = jax.nn.sigmoid(gates[0 * H:1 * H])
        f = jax.nn.sigmoid(gates[1 * H:2 * H])
        g = jnp.tanh(gates[2 * H:3 * H])
        o = jax.nn.sigmoid(gates[3 * H:4 * H])
        c = f * c + i * g
        h = o * jnp.tanh(c)
        return (h, c), h

    (_, _), hs = lax.scan(cell, (jnp.zeros(H), jnp.zeros(H)), embeds)
    return hs @ params["w_out"].T + params["b_out"]


if __name__ == "__main__":
    # Small shapes consistent with the module's forward (batch=1 sentence).
    vocab_size = 50
    embedding_dim = 16
    hidden_dim = 32
    num_classes = 5          # len(category_list); output dim = num_classes + 1
    seq_len = 8

    key = jax.random.PRNGKey(0)
    pkey, skey = jax.random.split(key)
    params = init_params(pkey, vocab_size, embedding_dim, hidden_dim, num_classes)
    sentence = jax.random.randint(skey, (seq_len,), 0, vocab_size, dtype=jnp.int32)

    scores = lstm_classification_forward(sentence, params, hidden_dim)
    scores = jax.block_until_ready(scores)

    ref = _reference_forward(sentence, params, hidden_dim)
    assert scores.shape == (seq_len, num_classes + 1)
    assert jnp.allclose(scores, ref, atol=1e-5, rtol=1e-5)

    # TODO(synk): batching multiple sentences per call would be the only change that
    # moves this latency-bound recurrence toward compute-bound, but the module API is batch=1.
    print("KERNEL_OK")
</pallas_src>

<mosaic_0001>
module attributes {stable_mosaic.version = 11 : i64} {
  func.func @_lstm_cls_kernel(%arg0: i32, %arg1: memref<8x16xf32, #tpu.memory_space<vmem>>, %arg2: memref<16x128xf32, #tpu.memory_space<vmem>>, %arg3: memref<32x128xf32, #tpu.memory_space<vmem>>, %arg4: memref<1x128xf32, #tpu.memory_space<vmem>>, %arg5: memref<32x128xf32, #tpu.memory_space<vmem>>, %arg6: memref<1x128xf32, #tpu.memory_space<vmem>>, %arg7: memref<8x128xf32, #tpu.memory_space<vmem>>, %arg8: memref<8x128xf32, #tpu.memory_space<vmem>>, %arg9: memref<8x32xf32, #tpu.memory_space<vmem>>) attributes {dimension_semantics = [#tpu.dimension_semantics<arbitrary>], iteration_bounds = array<i64: 1>, scalar_prefetch = 0 : i64, scratch_operands = 2 : i64, tpu.core_type = #tpu.core_type<tc>, window_params = [{pipeline_mode = #tpu.pipeline_mode<synchronous>, transform_indices = @transform_0, window_bounds = array<i64: 8, 16>}, {pipeline_mode = #tpu.pipeline_mode<synchronous>, transform_indices = @transform_1, window_bounds = array<i64: 16, 128>}, {pipeline_mode = #tpu.pipeline_mode<synchronous>, transform_indices = @transform_2, window_bounds = array<i64: 32, 128>}, {pipeline_mode = #tpu.pipeline_mode<synchronous>, transform_indices = @transform_3, window_bounds = array<i64: 1, 128>}, {pipeline_mode = #tpu.pipeline_mode<synchronous>, transform_indices = @transform_4, window_bounds = array<i64: 32, 128>}, {pipeline_mode = #tpu.pipeline_mode<synchronous>, transform_indices = @transform_5, window_bounds = array<i64: 1, 128>}, {pipeline_mode = #tpu.pipeline_mode<synchronous>, transform_indices = @transform_6, window_bounds = array<i64: 8, 128>}]} {
    %c0 = arith.constant 0 : index
    %c0_0 = arith.constant 0 : index
    %0 = vector.load %arg3[%c0, %c0_0] : memref<32x128xf32, #tpu.memory_space<vmem>>, vector<32x128xf32>
    %c0_1 = arith.constant 0 : index
    %c0_2 = arith.constant 0 : index
    %1 = vector.load %arg1[%c0_1, %c0_2] : memref<8x16xf32, #tpu.memory_space<vmem>>, vector<8x16xf32>
    %c0_3 = arith.constant 0 : index
    %c0_4 = arith.constant 0 : index
    %2 = vector.load %arg2[%c0_3, %c0_4] : memref<16x128xf32, #tpu.memory_space<vmem>>, vector<16x128xf32>
    %cst = arith.constant dense<0.000000e+00> : vector<8x128xf32>
    %3 = tpu.matmul %1, %2, %cst {dimension_numbers = #tpu.dot_dimension_numbers<[1], [0], [0], [1], [0, 0, 1, 1], [], []>} : vector<8x16xf32>, vector<16x128xf32>, vector<8x128xf32> -> vector<8x128xf32>
    %c0_5 = arith.constant 0 : index
    %c0_6 = arith.constant 0 : index
    %4 = vector.load %arg4[%c0_5, %c0_6] : memref<1x128xf32, #tpu.memory_space<vmem>>, vector<1x128xf32>
    %5 = vector.broadcast %4 : vector<1x128xf32> to vector<8x128xf32>
    %6 = arith.addf %3, %5 : vector<8x128xf32>
    %c0_7 = arith.constant 0 : index
    %c0_8 = arith.constant 0 : index
    %7 = vector.load %arg8[%c0_7, %c0_8] : memref<8x128xf32, #tpu.memory_space<vmem>>, vector<8x128xf32>
    tpu.vector_store %arg8[%c0_7, %c0_8], %6 {strides = array<i32>} : memref<8x128xf32, #tpu.memory_space<vmem>>, vector<8x128xf32>,
    %cst_9 = arith.constant 0.000000e+00 : f32
    %8 = vector.broadcast %cst_9 : f32 to vector<1x32xf32>
    %cst_10 = arith.constant 0.000000e+00 : f32
    %9 = vector.broadcast %cst_10 : f32 to vector<1x32xf32>
    %c0_i32 = arith.constant 0 : i32
    %10 = arith.index_cast %c0_i32 : i32 to index
    %c0_11 = arith.constant 0 : index
    %11 = vector.load %arg8[%10, %c0_11] : memref<8x128xf32, #tpu.memory_space<vmem>>, vector<1x128xf32>
    %cst_12 = arith.constant dense<0.000000e+00> : vector<1x128xf32>
    %12 = tpu.matmul %8, %0, %cst_12 {dimension_numbers = #tpu.dot_dimension_numbers<[1], [0], [0], [1], [0, 0, 1, 1], [], []>} : vector<1x32xf32>, vector<32x128xf32>, vector<1x128xf32> -> vector<1x128xf32>
    %13 = arith.addf %11, %12 : vector<1x128xf32>
    %14 = arith.negf %13 : vector<1x128xf32>
    %15 = math.exp %14 : vector<1x128xf32>
    %cst_13 = arith.constant 1.000000e+00 : f32
    %16 = vector.broadcast %cst_13 : f32 to vector<1x128xf32>
    %17 = arith.addf %16, %15 : vector<1x128xf32>
    %18 = arith.divf %16, %17 : vector<1x128xf32>
    %19 = math.tanh %13 : vector<1x128xf32>
    %20 = vector.extract_strided_slice %18 {offsets = [0, 0], sizes = [1, 32], strides = [1, 1]} : vector<1x128xf32> to vector<1x32xf32>
    %21 = vector.extract_strided_slice %18 {offsets = [0, 32], sizes = [1, 32], strides = [1, 1]} : vector<1x128xf32> to vector<1x32xf32>
    %22 = vector.extract_strided_slice %19 {offsets = [0, 64], sizes = [1, 32], strides = [1, 1]} : vector<1x128xf32> to vector<1x32xf32>
    %23 = vector.extract_strided_slice %18 {offsets = [0, 96], sizes = [1, 32], strides = [1, 1]} : vector<1x128xf32> to vector<1x32xf32>
    %24 = arith.mulf %21, %9 : vector<1x32xf32>
    %25 = arith.mulf %20, %22 : vector<1x32xf32>
    %26 = arith.addf %24, %25 : vector<1x32xf32>
    %27 = math.tanh %26 : vector<1x32xf32>
    %28 = arith.mulf %23, %27 : vector<1x32xf32>
    %29 = arith.index_cast %c0_i32 : i32 to index
    %c0_14 = arith.constant 0 : index
    %30 = vector.load %arg9[%29, %c0_14] : memref<8x32xf32, #tpu.memory_space<vmem>>, vector<1x32xf32>
    tpu.vector_store %arg9[%29, %c0_14], %28 {strides = array<i32>} : memref<8x32xf32, #tpu.memory_space<vmem>>, vector<1x32xf32>,
    %c1_i32 = arith.constant 1 : i32
    %31 = arith.index_cast %c1_i32 : i32 to index
    %c0_15 = arith.constant 0 : index
    %32 = vector.load %arg8[%31, %c0_15] : memref<8x128xf32, #tpu.memory_space<vmem>>, vector<1x128xf32>
    %cst_16 = arith.constant dense<0.000000e+00> : vector<1x128xf32>
    %33 = tpu.matmul %28, %0, %cst_16 {dimension_numbers = #tpu.dot_dimension_numbers<[1], [0], [0], [1], [0, 0, 1, 1], [], []>} : vector<1x32xf32>, vector<32x128xf32>, vector<1x128xf32> -> vector<1x128xf32>
    %34 = arith.addf %32, %33 : vector<1x128xf32>
    %35 = arith.negf %34 : vector<1x128xf32>
    %36 = math.exp %35 : vector<1x128xf32>
    %cst_17 = arith.constant 1.000000e+00 : f32
    %37 = vector.broadcast %cst_17 : f32 to vector<1x128xf32>
    %38 = arith.addf %37, %36 : vector<1x128xf32>
    %39 = arith.divf %37, %38 : vector<1x128xf32>
    %40 = math.tanh %34 : vector<1x128xf32>
    %41 = vector.extract_strided_slice %39 {offsets = [0, 0], sizes = [1, 32], strides = [1, 1]} : vector<1x128xf32> to vector<1x32xf32>
    %42 = vector.extract_strided_slice %39 {offsets = [0, 32], sizes = [1, 32], strides = [1, 1]} : vector<1x128xf32> to vector<1x32xf32>
    %43 = vector.extract_strided_slice %40 {offsets = [0, 64], sizes = [1, 32], strides = [1, 1]} : vector<1x128xf32> to vector<1x32xf32>
    %44 = vector.extract_strided_slice %39 {offsets = [0, 96], sizes = [1, 32], strides = [1, 1]} : vector<1x128xf32> to vector<1x32xf32>
    %45 = arith.mulf %42, %26 : vector<1x32xf32>
    %46 = arith.mulf %41, %43 : vector<1x32xf32>
    %47 = arith.addf %45, %46 : vector<1x32xf32>
    %48 = math.tanh %47 : vector<1x32xf32>
    %49 = arith.mulf %44, %48 : vector<1x32xf32>
    %50 = arith.index_cast %c1_i32 : i32 to index
    %c0_18 = arith.constant 0 : index
    %51 = vector.load %arg9[%50, %c0_18] : memref<8x32xf32, #tpu.memory_space<vmem>>, vector<1x32xf32>
    tpu.vector_store %arg9[%50, %c0_18], %49 {strides = array<i32>} : memref<8x32xf32, #tpu.memory_space<vmem>>, vector<1x32xf32>,
    %c2_i32 = arith.constant 2 : i32
    %52 = arith.index_cast %c2_i32 : i32 to index
    %c0_19 = arith.constant 0 : index
    %53 = vector.load %arg8[%52, %c0_19] : memref<8x128xf32, #tpu.memory_space<vmem>>, vector<1x128xf32>
    %cst_20 = arith.constant dense<0.000000e+00> : vector<1x128xf32>
    %54 = tpu.matmul %49, %0, %cst_20 {dimension_numbers = #tpu.dot_dimension_numbers<[1], [0], [0], [1], [0, 0, 1, 1], [], []>} : vector<1x32xf32>, vector<32x128xf32>, vector<1x128xf32> -> vector<1x128xf32>
    %55 = arith.addf %53, %54 : vector<1x128xf32>
    %56 = arith.negf %55 : vector<1x128xf32>
    %57 = math.exp %56 : vector<1x128xf32>
    %cst_21 = arith.constant 1.000000e+00 : f32
    %58 = vector.broadcast %cst_21 : f32 to vector<1x128xf32>
    %59 = arith.addf %58, %57 : vector<1x128xf32>
    %60 = arith.divf %58, %59 : vector<1x128xf32>
    %61 = math.tanh %55 : vector<1x128xf32>
    %62 = vector.extract_strided_slice %60 {offsets = [0, 0], sizes = [1, 32], strides = [1, 1]} : vector<1x128xf32> to vector<1x32xf32>
    %63 = vector.extract_strided_slice %60 {offsets = [0, 32], sizes = [1, 32], strides = [1, 1]} : vector<1x128xf32> to vector<1x32xf32>
    %64 = vector.extract_strided_slice %61 {offsets = [0, 64], sizes = [1, 32], strides = [1, 1]} : vector<1x128xf32> to vector<1x32xf32>
    %65 = vector.extract_strided_slice %60 {offsets = [0, 96], sizes = [1, 32], strides = [1, 1]} : vector<1x128xf32> to vector<1x32xf32>
    %66 = arith.mulf %63, %47 : vector<1x32xf32>
    %67 = arith.mulf %62, %64 : vector<1x32xf32>
    %68 = arith.addf %66, %67 : vector<1x32xf32>
    %69 = math.tanh %68 : vector<1x32xf32>
    %70 = arith.mulf %65, %69 : vector<1x32xf32>
    %71 = arith.index_cast %c2_i32 : i32 to index
    %c0_22 = arith.constant 0 : index
    %72 = vector.load %arg9[%71, %c0_22] : memref<8x32xf32, #tpu.memory_space<vmem>>, vector<1x32xf32>
    tpu.vector_store %arg9[%71, %c0_22], %70 {strides = array<i32>} : memref<8x32xf32, #tpu.memory_space<vmem>>, vector<1x32xf32>,
    %c3_i32 = arith.constant 3 : i32
    %73 = arith.index_cast %c3_i32 : i32 to index
    %c0_23 = arith.constant 0 : index
    %74 = vector.load %arg8[%73, %c0_23] : memref<8x128xf32, #tpu.memory_space<vmem>>, vector<1x128xf32>
    %cst_24 = arith.constant dense<0.000000e+00> : vector<1x128xf32>
    %75 = tpu.matmul %70, %0, %cst_24 {dimension_numbers = #tpu.dot_dimension_numbers<[1], [0], [0], [1], [0, 0, 1, 1], [], []>} : vector<1x32xf32>, vector<32x128xf32>, vector<1x128xf32> -> vector<1x128xf32>
    %76 = arith.addf %74, %75 : vector<1x128xf32>
    %77 = arith.negf %76 : vector<1x128xf32>
    %78 = math.exp %77 : vector<1x128xf32>
    %cst_25 = arith.constant 1.000000e+00 : f32
    %79 = vector.broadcast %cst_25 : f32 to vector<1x128xf32>
    %80 = arith.addf %79, %78 : vector<1x128xf32>
    %81 = arith.divf %79, %80 : vector<1x128xf32>
    %82 = math.tanh %76 : vector<1x128xf32>
    %83 = vector.extract_strided_slice %81 {offsets = [0, 0], sizes = [1, 32], strides = [1, 1]} : vector<1x128xf32> to vector<1x32xf32>
    %84 = vector.extract_strided_slice %81 {offsets = [0, 32], sizes = [1, 32], strides = [1, 1]} : vector<1x128xf32> to vector<1x32xf32>
    %85 = vector.extract_strided_slice %82 {offsets = [0, 64], sizes = [1, 32], strides = [1, 1]} : vector<1x128xf32> to vector<1x32xf32>
    %86 = vector.extract_strided_slice %81 {offsets = [0, 96], sizes = [1, 32], strides = [1, 1]} : vector<1x128xf32> to vector<1x32xf32>
    %87 = arith.mulf %84, %68 : vector<1x32xf32>
    %88 = arith.mulf %83, %85 : vector<1x32xf32>
    %89 = arith.addf %87, %88 : vector<1x32xf32>
    %90 = math.tanh %89 : vector<1x32xf32>
    %91 = arith.mulf %86, %90 : vector<1x32xf32>
    %92 = arith.index_cast %c3_i32 : i32 to index
    %c0_26 = arith.constant 0 : index
    %93 = vector.load %arg9[%92, %c0_26] : memref<8x32xf32, #tpu.memory_space<vmem>>, vector<1x32xf32>
    tpu.vector_store %arg9[%92, %c0_26], %91 {strides = array<i32>} : memref<8x32xf32, #tpu.memory_space<vmem>>, vector<1x32xf32>,
    %c4_i32 = arith.constant 4 : i32
    %94 = arith.index_cast %c4_i32 : i32 to index
    %c0_27 = arith.constant 0 : index
    %95 = vector.load %arg8[%94, %c0_27] : memref<8x128xf32, #tpu.memory_space<vmem>>, vector<1x128xf32>
    %cst_28 = arith.constant dense<0.000000e+00> : vector<1x128xf32>
    %96 = tpu.matmul %91, %0, %cst_28 {dimension_numbers = #tpu.dot_dimension_numbers<[1], [0], [0], [1], [0, 0, 1, 1], [], []>} : vector<1x32xf32>, vector<32x128xf32>, vector<1x128xf32> -> vector<1x128xf32>
    %97 = arith.addf %95, %96 : vector<1x128xf32>
    %98 = arith.negf %97 : vector<1x128xf32>
    %99 = math.exp %98 : vector<1x128xf32>
    %cst_29 = arith.constant 1.000000e+00 : f32
    %100 = vector.broadcast %cst_29 : f32 to vector<1x128xf32>
    %101 = arith.addf %100, %99 : vector<1x128xf32>
    %102 = arith.divf %100, %101 : vector<1x128xf32>
    %103 = math.tanh %97 : vector<1x128xf32>
    %104 = vector.extract_strided_slice %102 {offsets = [0, 0], sizes = [1, 32], strides = [1, 1]} : vector<1x128xf32> to vector<1x32xf32>
    %105 = vector.extract_strided_slice %102 {offsets = [0, 32], sizes = [1, 32], strides = [1, 1]} : vector<1x128xf32> to vector<1x32xf32>
    %106 = vector.extract_strided_slice %103 {offsets = [0, 64], sizes = [1, 32], strides = [1, 1]} : vector<1x128xf32> to vector<1x32xf32>
    %107 = vector.extract_strided_slice %102 {offsets = [0, 96], sizes = [1, 32], strides = [1, 1]} : vector<1x128xf32> to vector<1x32xf32>
    %108 = arith.mulf %105, %89 : vector<1x32xf32>
    %109 = arith.mulf %104, %106 : vector<1x32xf32>
    %110 = arith.addf %108, %109 : vector<1x32xf32>
    %111 = math.tanh %110 : vector<1x32xf32>
    %112 = arith.mulf %107, %111 : vector<1x32xf32>
    %113 = arith.index_cast %c4_i32 : i32 to index
    %c0_30 = arith.constant 0 : index
    %114 = vector.load %arg9[%113, %c0_30] : memref<8x32xf32, #tpu.memory_space<vmem>>, vector<1x32xf32>
    tpu.vector_store %arg9[%113, %c0_30], %112 {strides = array<i32>} : memref<8x32xf32, #tpu.memory_space<vmem>>, vector<1x32xf32>,
    %c5_i32 = arith.constant 5 : i32
    %115 = arith.index_cast %c5_i32 : i32 to index
    %c0_31 = arith.constant 0 : index
    %116 = vector.load %arg8[%115, %c0_31] : memref<8x128xf32, #tpu.memory_space<vmem>>, vector<1x128xf32>
    %cst_32 = arith.constant dense<0.000000e+00> : vector<1x128xf32>
    %117 = tpu.matmul %112, %0, %cst_32 {dimension_numbers = #tpu.dot_dimension_numbers<[1], [0], [0], [1], [0, 0, 1, 1], [], []>} : vector<1x32xf32>, vector<32x128xf32>, vector<1x128xf32> -> vector<1x128xf32>
    %118 = arith.addf %116, %117 : vector<1x128xf32>
    %119 = arith.negf %118 : vector<1x128xf32>
    %120 = math.exp %119 : vector<1x128xf32>
    %cst_33 = arith.constant 1.000000e+00 : f32
    %121 = vector.broadcast %cst_33 : f32 to vector<1x128xf32>
    %122 = arith.addf %121, %120 : vector<1x128xf32>
    %123 = arith.divf %121, %122 : vector<1x128xf32>
    %124 = math.tanh %118 : vector<1x128xf32>
    %125 = vector.extract_strided_slice %123 {offsets = [0, 0], sizes = [1, 32], strides = [1, 1]} : vector<1x128xf32> to vector<1x32xf32>
    %126 = vector.extract_strided_slice %123 {offsets = [0, 32], sizes = [1, 32], strides = [1, 1]} : vector<1x128xf32> to vector<1x32xf32>
    %127 = vector.extract_strided_slice %124 {offsets = [0, 64], sizes = [1, 32], strides = [1, 1]} : vector<1x128xf32> to vector<1x32xf32>
    %128 = vector.extract_strided_slice %123 {offsets = [0, 96], sizes = [1, 32], strides = [1, 1]} : vector<1x128xf32> to vector<1x32xf32>
    %129 = arith.mulf %126, %110 : vector<1x32xf32>
    %130 = arith.mulf %125, %127 : vector<1x32xf32>
    %131 = arith.addf %129, %130 : vector<1x32xf32>
    %132 = math.tanh %131 : vector<1x32xf32>
    %133 = arith.mulf %128, %132 : vector<1x32xf32>
    %134 = arith.index_cast %c5_i32 : i32 to index
    %c0_34 = arith.constant 0 : index
    %135 = vector.load %arg9[%134, %c0_34] : memref<8x32xf32, #tpu.memory_space<vmem>>, vector<1x32xf32>
    tpu.vector_store %arg9[%134, %c0_34], %133 {strides = array<i32>} : memref<8x32xf32, #tpu.memory_space<vmem>>, vector<1x32xf32>,
    %c6_i32 = arith.constant 6 : i32
    %136 = arith.index_cast %c6_i32 : i32 to index
    %c0_35 = arith.constant 0 : index
    %137 = vector.load %arg8[%136, %c0_35] : memref<8x128xf32, #tpu.memory_space<vmem>>, vector<1x128xf32>
    %cst_36 = arith.constant dense<0.000000e+00> : vector<1x128xf32>
    %138 = tpu.matmul %133, %0, %cst_36 {dimension_numbers = #tpu.dot_dimension_numbers<[1], [0], [0], [1], [0, 0, 1, 1], [], []>} : vector<1x32xf32>, vector<32x128xf32>, vector<1x128xf32> -> vector<1x128xf32>
    %139 = arith.addf %137, %138 : vector<1x128xf32>
    %140 = arith.negf %139 : vector<1x128xf32>
    %141 = math.exp %140 : vector<1x128xf32>
    %cst_37 = arith.constant 1.000000e+00 : f32
    %142 = vector.broadcast %cst_37 : f32 to vector<1x128xf32>
    %143 = arith.addf %142, %141 : vector<1x128xf32>
    %144 = arith.divf %142, %143 : vector<1x128xf32>
    %145 = math.tanh %139 : vector<1x128xf32>
    %146 = vector.extract_strided_slice %144 {offsets = [0, 0], sizes = [1, 32], strides = [1, 1]} : vector<1x128xf32> to vector<1x32xf32>
    %147 = vector.extract_strided_slice %144 {offsets = [0, 32], sizes = [1, 32], strides = [1, 1]} : vector<1x128xf32> to vector<1x32xf32>
    %148 = vector.extract_strided_slice %145 {offsets = [0, 64], sizes = [1, 32], strides = [1, 1]} : vector<1x128xf32> to vector<1x32xf32>
    %149 = vector.extract_strided_slice %144 {offsets = [0, 96], sizes = [1, 32], strides = [1, 1]} : vector<1x128xf32> to vector<1x32xf32>
    %150 = arith.mulf %147, %131 : vector<1x32xf32>
    %151 = arith.mulf %146, %148 : vector<1x32xf32>
    %152 = arith.addf %150, %151 : vector<1x32xf32>
    %153 = math.tanh %152 : vector<1x32xf32>
    %154 = arith.mulf %149, %153 : vector<1x32xf32>
    %155 = arith.index_cast %c6_i32 : i32 to index
    %c0_38 = arith.constant 0 : index
    %156 = vector.load %arg9[%155, %c0_38] : memref<8x32xf32, #tpu.memory_space<vmem>>, vector<1x32xf32>
    tpu.vector_store %arg9[%155, %c0_38], %154 {strides = array<i32>} : memref<8x32xf32, #tpu.memory_space<vmem>>, vector<1x32xf32>,
    %c7_i32 = arith.constant 7 : i32
    %157 = arith.index_cast %c7_i32 : i32 to index
    %c0_39 = arith.constant 0 : index
    %158 = vector.load %arg8[%157, %c0_39] : memref<8x128xf32, #tpu.memory_space<vmem>>, vector<1x128xf32>
    %cst_40 = arith.constant dense<0.000000e+00> : vector<1x128xf32>
    %159 = tpu.matmul %154, %0, %cst_40 {dimension_numbers = #tpu.dot_dimension_numbers<[1], [0], [0], [1], [0, 0, 1, 1], [], []>} : vector<1x32xf32>, vector<32x128xf32>, vector<1x128xf32> -> vector<1x128xf32>
    %160 = arith.addf %158, %159 : vector<1x128xf32>
    %161 = arith.negf %160 : vector<1x128xf32>
    %162 = math.exp %161 : vector<1x128xf32>
    %cst_41 = arith.constant 1.000000e+00 : f32
    %163 = vector.broadcast %cst_41 : f32 to vector<1x128xf32>
    %164 = arith.addf %163, %162 : vector<1x128xf32>
    %165 = arith.divf %163, %164 : vector<1x128xf32>
    %166 = math.tanh %160 : vector<1x128xf32>
    %167 = vector.extract_strided_slice %165 {offsets = [0, 0], sizes = [1, 32], strides = [1, 1]} : vector<1x128xf32> to vector<1x32xf32>
    %168 = vector.extract_strided_slice %165 {offsets = [0, 32], sizes = [1, 32], strides = [1, 1]} : vector<1x128xf32> to vector<1x32xf32>
    %169 = vector.extract_strided_slice %166 {offsets = [0, 64], sizes = [1, 32], strides = [1, 1]} : vector<1x128xf32> to vector<1x32xf32>
    %170 = vector.extract_strided_slice %165 {offsets = [0, 96], sizes = [1, 32], strides = [1, 1]} : vector<1x128xf32> to vector<1x32xf32>
    %171 = arith.mulf %168, %152 : vector<1x32xf32>
    %172 = arith.mulf %167, %169 : vector<1x32xf32>
    %173 = arith.addf %171, %172 : vector<1x32xf32>
    %174 = math.tanh %173 : vector<1x32xf32>
    %175 = arith.mulf %170, %174 : vector<1x32xf32>
    %176 = arith.index_cast %c7_i32 : i32 to index
    %c0_42 = arith.constant 0 : index
    %177 = vector.load %arg9[%176, %c0_42] : memref<8x32xf32, #tpu.memory_space<vmem>>, vector<1x32xf32>
    tpu.vector_store %arg9[%176, %c0_42], %175 {strides = array<i32>} : memref<8x32xf32, #tpu.memory_space<vmem>>, vector<1x32xf32>,
    %c8_i32 = arith.constant 8 : i32
    %c0_43 = arith.constant 0 : index
    %c0_44 = arith.constant 0 : index
    %178 = vector.load %arg9[%c0_43, %c0_44] : memref<8x32xf32, #tpu.memory_space<vmem>>, vector<8x32xf32>
    %c0_45 = arith.constant 0 : index
    %c0_46 = arith.constant 0 : index
    %179 = vector.load %arg5[%c0_45, %c0_46] : memref<32x128xf32, #tpu.memory_space<vmem>>, vector<32x128xf32>
    %cst_47 = arith.constant dense<0.000000e+00> : vector<8x128xf32>
    %180 = tpu.matmul %178, %179, %cst_47 {dimension_numbers = #tpu.dot_dimension_numbers<[1], [0], [0], [1], [0, 0, 1, 1], [], []>} : vector<8x32xf32>, vector<32x128xf32>, vector<8x128xf32> -> vector<8x128xf32>
    %c0_48 = arith.constant 0 : index
    %c0_49 = arith.constant 0 : index
    %181 = vector.load %arg6[%c0_48, %c0_49] : memref<1x128xf32, #tpu.memory_space<vmem>>, vector<1x128xf32>
    %182 = vector.broadcast %181 : vector<1x128xf32> to vector<8x128xf32>
    %183 = arith.addf %180, %182 : vector<8x128xf32>
    %c0_50 = arith.constant 0 : index
    %c0_51 = arith.constant 0 : index
    %184 = vector.load %arg7[%c0_50, %c0_51] : memref<8x128xf32, #tpu.memory_space<vmem>>, vector<8x128xf32>
    tpu.vector_store %arg7[%c0_50, %c0_51], %183 {strides = array<i32>} : memref<8x128xf32, #tpu.memory_space<vmem>>, vector<8x128xf32>,
    return
  }
  func.func @transform_0(%arg0: i32) -> (i32, i32) {
    %c0_i32 = arith.constant 0 : i32
    %c0_i32_0 = arith.constant 0 : i32
    %c0_i32_1 = arith.constant 0 : i32
    return %c0_i32, %c0_i32_0 : i32, i32
  }
  func.func @transform_1(%arg0: i32) -> (i32, i32) {
    %c0_i32 = arith.constant 0 : i32
    %c0_i32_0 = arith.constant 0 : i32
    %c0_i32_1 = arith.constant 0 : i32
    return %c0_i32, %c0_i32_0 : i32, i32
  }
  func.func @transform_2(%arg0: i32) -> (i32, i32) {
    %c0_i32 = arith.constant 0 : i32
    %c0_i32_0 = arith.constant 0 : i32
    %c0_i32_1 = arith.constant 0 : i32
    return %c0_i32, %c0_i32_0 : i32, i32
  }
  func.func @transform_3(%arg0: i32) -> (i32, i32) {
    %c0_i32 = arith.constant 0 : i32
    %c0_i32_0 = arith.constant 0 : i32
    %c0_i32_1 = arith.constant 0 : i32
    return %c0_i32, %c0_i32_0 : i32, i32
  }
  func.func @transform_4(%arg0: i32) -> (i32, i32) {
    %c0_i32 = arith.constant 0 : i32
    %c0_i32_0 = arith.constant 0 : i32
    %c0_i32_1 = arith.constant 0 : i32
    return %c0_i32, %c0_i32_0 : i32, i32
  }
  func.func @transform_5(%arg0: i32) -> (i32, i32) {
    %c0_i32 = arith.constant 0 : i32
    %c0_i32_0 = arith.constant 0 : i32
    %c0_i32_1 = arith.constant 0 : i32
    return %c0_i32, %c0_i32_0 : i32, i32
  }
  func.func @transform_6(%arg0: i32) -> (i32, i32) {
    %c0_i32 = arith.constant 0 : i32
    %c0_i32_0 = arith.constant 0 : i32
    %c0_i32_1 = arith.constant 0 : i32
    return %c0_i32, %c0_i32_0 : i32, i32
  }
}

</mosaic_0001>

<llo_original>
// kernel: tpu_custom_call.1
$region0: #{tpu_custom_call.1}
  #allocation0 [shape = 'u32[]', space=smem, size = 0x4, offset = 0x4, fixed_abs, tag = 'smem constant byte address 0x4 - core index']
  #allocation1 [shape = 'u32[72,128]{1,0:T(1,128)}', space=vmem, size = 0x9000, scoped, tag = 'internal scratch']
  #allocation2 [shape = 'f32[8,128]{1,0:T(8,128)}', space=vmem, size = 0x1000, scoped, tag = 'scratch operand']
  #allocation3 [shape = 'f32[8,32]{1,0:T(8,128)}', space=vmem, size = 0x1000, scoped, tag = 'scratch operand']
  %s0 = inlined_call_operand.hbm [shape: f32[8,16], index: 0, kind: input, shape index: {}]
  %s1 = inlined_call_operand.hbm [shape: f32[16,128], index: 1, kind: input, shape index: {}]
  %s2 = inlined_call_operand.hbm [shape: f32[32,128], index: 2, kind: input, shape index: {}]
  %s3 = inlined_call_operand.vmem [shape: f32[1,128], index: 3, kind: input, shape index: {}]
  %s4 = inlined_call_operand.hbm [shape: f32[32,128], index: 4, kind: input, shape index: {}]
  %s5 = inlined_call_operand.vmem [shape: f32[1,128], index: 5, kind: input, shape index: {}]
  %s6 = inlined_call_operand.hbm [shape: f32[8,128], index: 6, kind: output, shape index: {}]
  %s7 = sld [smem:[#allocation0]]
  $region50: #{tpu_custom_call.1} parent=0
    _
  %s9 = ssub.s32 1, %s7
  %s10 = scalar_select 0, %s9, %s7
  $region1: #{tpu_custom_call.1} parent=0
    #allocation4 [shape = 'u8[4096]{0}', space=vmem, size = 0x1000, scoped, tag = 'input window, operand 0, single buffered']
    #allocation5 [shape = 's32[1]{0}', space=sflag, size = 0x4, scoped, tag = 'scoped memory for tpu_custom_call.1']
    #allocation6 [shape = 's32[1]{0}', space=sflag, size = 0x4, scoped, tag = 'scoped memory for tpu_custom_call.1']
    #allocation7 [shape = 'u8[8192]{0}', space=vmem, size = 0x2000, scoped, tag = 'input window, operand 1, single buffered']
    #allocation8 [shape = 's32[1]{0}', space=sflag, size = 0x4, scoped, tag = 'scoped memory for tpu_custom_call.1']
    #allocation9 [shape = 'u8[16384]{0}', space=vmem, size = 0x4000, scoped, tag = 'input window, operand 2, single buffered']
    #allocation10 [shape = 'u8[16384]{0}', space=vmem, size = 0x4000, scoped, tag = 'input window, operand 4, single buffered']
    #allocation11 [shape = 's32[1]{0}', space=sflag, size = 0x4, scoped, tag = 'scoped memory for tpu_custom_call.1']
    #allocation12 [shape = 'u8[4096]{0}', space=vmem, size = 0x1000, scoped, tag = 'output window, operand 0, single buffered']
    %11 = vsyncpa [#allocation5], 0
    %12 = vsyncpa [#allocation8], 0
    %13 = vsyncpa [#allocation11], 0
    %14 = vsyncpa [#allocation6], 0
    // Predicated region
    $region2: #{tpu_custom_call.1} parent=1 // pred_check
      _
    $region3: #{tpu_custom_call.1} parent=1 // pred_check_branch
      %16 = sbr.rel (0) target = $region5
    $region4: #{tpu_custom_call.1} parent=1 // pred_region
      %18 = vsyncadd [#allocation5], 0
      %s20 = sshll.u32 %s0, 4
      %s21 = int_to_ptr.hbm [resolvable:$true] %s20
      %s22 = sshll.u32 [#allocation4], 4
      %s23 = int_to_ptr.vmem [resolvable:$true] %s22
      %25 = dma.hbm_to_vmem [thread:$0]  %s21, 128, %s23, [#allocation5]
    $region5: #{tpu_custom_call.1} parent=1 // pred_fallthru
      _
    // Predicated region
    $region6: #{tpu_custom_call.1} parent=1 // pred_check
      _
    $region7: #{tpu_custom_call.1} parent=1 // pred_check_branch
      %27 = sbr.rel (0) target = $region9
    $region8: #{tpu_custom_call.1} parent=1 // pred_region
      %29 = vsyncadd [#allocation8], 0
      %s30 = sshll.u32 %s1, 4
      %s31 = int_to_ptr.hbm [resolvable:$true] %s30
      %s32 = sshll.u32 [#allocation7], 4
      %s33 = int_to_ptr.vmem [resolvable:$true] %s32
      %38 = dma.hbm_to_vmem [thread:$0]  %s31, 256, %s33, [#allocation8], 128, 128, 8
    $region9: #{tpu_custom_call.1} parent=1 // pred_fallthru
      _
    // Predicated region
    $region10: #{tpu_custom_call.1} parent=1 // pred_check
      _
    $region11: #{tpu_custom_call.1} parent=1 // pred_check_branch
      %40 = sbr.rel (0) target = $region13
    $region12: #{tpu_custom_call.1} parent=1 // pred_region
      %42 = vsyncadd [#allocation8], 0
      %s43 = sshll.u32 %s2, 4
      %s44 = int_to_ptr.hbm [resolvable:$true] %s43
      %s45 = sshll.u32 [#allocation9], 4
      %s46 = int_to_ptr.vmem [resolvable:$true] %s45
      %51 = dma.hbm_to_vmem [thread:$0]  %s44, 512, %s46, [#allocation8], 128, 128, 8
    $region13: #{tpu_custom_call.1} parent=1 // pred_fallthru
      _
    // Predicated region
    $region14: #{tpu_custom_call.1} parent=1 // pred_check
      _
    $region15: #{tpu_custom_call.1} parent=1 // pred_check_branch
      %53 = sbr.rel (0) target = $region17
    $region16: #{tpu_custom_call.1} parent=1 // pred_region
      _
    $region17: #{tpu_custom_call.1} parent=1 // pred_fallthru
      _
    // Predicated region
    $region18: #{tpu_custom_call.1} parent=1 // pred_check
      _
    $region19: #{tpu_custom_call.1} parent=1 // pred_check_branch
      %55 = sbr.rel (0) target = $region21
    $region20: #{tpu_custom_call.1} parent=1 // pred_region
      %57 = vsyncadd [#allocation11], 0
      %s58 = sshll.u32 %s4, 4
      %s59 = int_to_ptr.hbm [resolvable:$true] %s58
      %s60 = sshll.u32 [#allocation10], 4
      %s61 = int_to_ptr.vmem [resolvable:$true] %s60
      %66 = dma.hbm_to_vmem [thread:$0]  %s59, 512, %s61, [#allocation11], 128, 128, 8
    $region21: #{tpu_custom_call.1} parent=1 // pred_fallthru
      _
    // Predicated region
    $region22: #{tpu_custom_call.1} parent=1 // pred_check
      _
    $region23: #{tpu_custom_call.1} parent=1 // pred_check_branch
      %68 = sbr.rel (0) target = $region25
    $region24: #{tpu_custom_call.1} parent=1 // pred_region
      _
    $region25: #{tpu_custom_call.1} parent=1 // pred_fallthru
      _
    // Predicated region
    $region26: #{tpu_custom_call.1} parent=1 // pred_check
      _
    $region27: #{tpu_custom_call.1} parent=1 // pred_check_branch
      %70 = sbr.rel (0) target = $region29
    $region28: #{tpu_custom_call.1} parent=1 // pred_region
      %72 = dma.done [#allocation5], 128
    $region29: #{tpu_custom_call.1} parent=1 // pred_fallthru
      _
    // Predicated region
    $region30: #{tpu_custom_call.1} parent=1 // pred_check
      _
    $region31: #{tpu_custom_call.1} parent=1 // pred_check_branch
      %74 = sbr.rel (0) target = $region33
    $region32: #{tpu_custom_call.1} parent=1 // pred_region
      %76 = dma.done [#allocation8], 256
    $region33: #{tpu_custom_call.1} parent=1 // pred_fallthru
      _
    // Predicated region
    $region34: #{tpu_custom_call.1} parent=1 // pred_check
      _
    $region35: #{tpu_custom_call.1} parent=1 // pred_check_branch
      %78 = sbr.rel (0) target = $region37
    $region36: #{tpu_custom_call.1} parent=1 // pred_region
      %80 = dma.done [#allocation8], 512
    $region37: #{tpu_custom_call.1} parent=1 // pred_fallthru
      _
    // Predicated region
    $region38: #{tpu_custom_call.1} parent=1 // pred_check
      _
    $region39: #{tpu_custom_call.1} parent=1 // pred_check_branch
      %82 = sbr.rel (0) target = $region41
    $region40: #{tpu_custom_call.1} parent=1 // pred_region
      %84 = dma.done [#allocation11], 512
    $region41: #{tpu_custom_call.1} parent=1 // pred_fallthru
      _
    %v85 = vld [vmem:[#allocation9] sm:$0xff]
    %v86 = vld [vmem:[#allocation9 + $0x8] sm:$0xff]
    %v87 = vld [vmem:[#allocation9 + $0x10] sm:$0xff]
    %v88 = vld [vmem:[#allocation9 + $0x18] sm:$0xff]
    %v89 = vld [vmem:[#allocation4] sm:$0xff]
    %v90 = vld [vmem:[#allocation7] sm:$0xff]
    %v91 = vld [vmem:[#allocation7 + $0x8] sm:$0xff]
    %v92 = vld [vmem:[%s3] sm:$0x1]
    %v94 = vperm.slane %v92, 0
    %vm96 = vcmask 130048
    %v98 = vsel %vm96, %v89, 0
    %100 = vmatpush.msra.mxu0 0.0
    %101 = vmatpush.msra.mxu0 0.0
    %102 = vmatpush.msra.mxu0 0.0
    %103 = vmatpush.msra.mxu0 0.0
    %104 = vmatpush.msra.mxu0 0.0
    %105 = vmatpush.msra.mxu0 0.0
    %106 = vmatpush.msra.mxu0 0.0
    %107 = vmatpush.msra.mxu0 0.0
    %108 = vmatpush.msra.mxu0 0.0
    %109 = vmatpush.msra.mxu0 0.0
    %110 = vmatpush.msra.mxu0 0.0
    %111 = vmatpush.msra.mxu0 0.0
    %112 = vmatpush.msra.mxu0 0.0
    %113 = vmatpush.msra.mxu0 0.0
    %114 = vmatpush.msra.mxu0 %v91
    %115 = vmatpush.msra.mxu0 %v90
    %116 = vmatmul.f32.gmra.mxu0 %v98
    %v117 = vpop.f32.mrf.mxu0
    %v118 = vadd.f32 %v94, %v117
    %119 = vdwg.mxu0
    %120 = vst [vmem:[#allocation2] sm:$0xff] %v118
    %v121 = vld [vmem:[#allocation2] sm:$0x1]
    %vm122 = vcmask 261120
    %v124 = vsel %vm122, 0.0, 0
    %126 = vmatpush.msra.mxu0 0.0
    %127 = vmatpush.msra.mxu0 0.0
    %128 = vmatpush.msra.mxu0 0.0
    %129 = vmatpush.msra.mxu0 0.0
    %130 = vmatpush.msra.mxu0 0.0
    %131 = vmatpush.msra.mxu0 0.0
    %132 = vmatpush.msra.mxu0 0.0
    %133 = vmatpush.msra.mxu0 0.0
    %134 = vmatpush.msra.mxu0 0.0
    %135 = vmatpush.msra.mxu0 0.0
    %136 = vmatpush.msra.mxu0 0.0
    %137 = vmatpush.msra.mxu0 0.0
    %138 = vmatpush.msra.mxu0 %v88
    %139 = vmatpush.msra.mxu0 %v87
    %140 = vmatpush.msra.mxu0 %v86
    %141 = vmatpush.msra.mxu0 %v85
    %142 = vmatmul.f32.gmra.mxu0 %v124
    %v143 = vpop.f32.mrf.mxu0
    %v144 = vadd.f32 0.0, %v143
    %145 = vdwg.mxu0
    %v146 = vadd.f32 %v121, %v144
    %v147 = vxor.u32 %v146, 2147483648
    %v148 = vmul.f32 %v147, 1.442695
    %v149 = vpow.pop %v148
    %v150 = vadd.f32 %v149, 1.0
    %v151 = vrcp.pop %v150
    %v152 = vmul.f32 %v150, %v151
    %v153 = vsub.f32 1.0, %v152
    %v154 = vmul.f32 %v151, %v153
    %v155 = vadd.f32 %v151, %v154
    %vm156 = vweird.f32 %v150
    %vm157 = vweird.f32 %v151
    %vm158 = vmor %vm156, %vm157
    %v159 = vsel %vm158, %v151, %v155
    %v160 = vand.u32 2147483647, %v150
    %vm161 = vcmp.eq.f32.partialorder %v160, 8.507059e+37
    %v162 = vand.u32 %v150, 2147483648
    %v163 = vor.u32 1.1754944e-38, %v162
    %v164 = vsel %vm161, %v163, %v159
    %v165 = vmul.f32 1.0, %v164
    %v166 = vtanh.pop %v146
    %v167 = vmul.f32 %v165, 0.0
    %169 = vrot.lane.b32.xlu0 %v166, 64
    %v170 = vpop.permute.xlu0 %169
    %v172 = vmul.f32 %v165, %v170
    %174 = vrot.lane.b32.xlu0 %v172, 32
    %v175 = vpop.permute.xlu0 %174
    %v177 = vadd.f32 %v167, %v175
    %v178 = vtanh.pop %v177
    %180 = vrot.lane.b32.xlu0 %v178, 64
    %v181 = vpop.permute.xlu0 %180
    %v183 = vmul.f32 %v165, %v181
    %185 = vrot.lane.b32.xlu0 %v183, 32
    %v186 = vpop.permute.xlu0 %185
    %vm188 = vcmask 253952
    %189 = vst.msk [vmem:[#allocation3] sm:$0x1] %vm188, %v186
    %v190 = vld [vmem:[#allocation2 + $0x1] sm:$0x1]
    %v191 = vsel %vm122, %v186, 0
    %193 = vmatpush.msra.mxu0 0.0
    %194 = vmatpush.msra.mxu0 0.0
    %195 = vmatpush.msra.mxu0 0.0
    %196 = vmatpush.msra.mxu0 0.0
    %197 = vmatpush.msra.mxu0 0.0
    %198 = vmatpush.msra.mxu0 0.0
    %199 = vmatpush.msra.mxu0 0.0
    %200 = vmatpush.msra.mxu0 0.0
    %201 = vmatpush.msra.mxu0 0.0
    %202 = vmatpush.msra.mxu0 0.0
    %203 = vmatpush.msra.mxu0 0.0
    %204 = vmatpush.msra.mxu0 0.0
    %205 = vmatpush.msra.mxu0 %v88
    %206 = vmatpush.msra.mxu0 %v87
    %207 = vmatpush.msra.mxu0 %v86
    %208 = vmatpush.msra.mxu0 %v85
    %209 = vmatmul.f32.gmra.mxu0 %v191
    %v210 = vpop.f32.mrf.mxu0
    %v211 = vadd.f32 0.0, %v210
    %212 = vdwg.mxu0
    %v213 = vadd.f32 %v190, %v211
    %v214 = vxor.u32 %v213, 2147483648
    %v215 = vmul.f32 %v214, 1.442695
    %v216 = vpow.pop %v215
    %v217 = vadd.f32 %v216, 1.0
    %v218 = vrcp.pop %v217
    %v219 = vmul.f32 %v217, %v218
    %v220 = vsub.f32 1.0, %v219
    %v221 = vmul.f32 %v218, %v220
    %v222 = vadd.f32 %v218, %v221
    %vm223 = vweird.f32 %v217
    %vm224 = vweird.f32 %v218
    %vm225 = vmor %vm223, %vm224
    %v226 = vsel %vm225, %v218, %v222
    %v227 = vand.u32 2147483647, %v217
    %vm228 = vcmp.eq.f32.partialorder %v227, 8.507059e+37
    %v229 = vand.u32 %v217, 2147483648
    %v230 = vor.u32 1.1754944e-38, %v229
    %v231 = vsel %vm228, %v230, %v226
    %v232 = vmul.f32 1.0, %v231
    %v233 = vtanh.pop %v213
    %v234 = vmul.f32 %v232, %v177
    %236 = vrot.lane.b32.xlu0 %v233, 64
    %v237 = vpop.permute.xlu0 %236
    %v239 = vmul.f32 %v232, %v237
    %241 = vrot.lane.b32.xlu0 %v239, 32
    %v242 = vpop.permute.xlu0 %241
    %v244 = vadd.f32 %v234, %v242
    %v245 = vtanh.pop %v244
    %247 = vrot.lane.b32.xlu0 %v245, 64
    %v248 = vpop.permute.xlu0 %247
    %v250 = vmul.f32 %v232, %v248
    %252 = vrot.lane.b32.xlu0 %v250, 32
    %v253 = vpop.permute.xlu0 %252
    %255 = vst.msk [vmem:[#allocation3 + $0x1] sm:$0x1] %vm188, %v253
    %v256 = vld [vmem:[#allocation2 + $0x2] sm:$0x1]
    %v257 = vsel %vm122, %v253, 0
    %259 = vmatpush.msra.mxu0 0.0
    %260 = vmatpush.msra.mxu0 0.0
    %261 = vmatpush.msra.mxu0 0.0
    %262 = vmatpush.msra.mxu0 0.0
    %263 = vmatpush.msra.mxu0 0.0
    %264 = vmatpush.msra.mxu0 0.0
    %265 = vmatpush.msra.mxu0 0.0
    %266 = vmatpush.msra.mxu0 0.0
    %267 = vmatpush.msra.mxu0 0.0
    %268 = vmatpush.msra.mxu0 0.0
    %269 = vmatpush.msra.mxu0 0.0
    %270 = vmatpush.msra.mxu0 0.0
    %271 = vmatpush.msra.mxu0 %v88
    %272 = vmatpush.msra.mxu0 %v87
    %273 = vmatpush.msra.mxu0 %v86
    %274 = vmatpush.msra.mxu0 %v85
    %275 = vmatmul.f32.gmra.mxu0 %v257
    %v276 = vpop.f32.mrf.mxu0
    %v277 = vadd.f32 0.0, %v276
    %278 = vdwg.mxu0
    %v279 = vadd.f32 %v256, %v277
    %v280 = vxor.u32 %v279, 2147483648
    %v281 = vmul.f32 %v280, 1.442695
    %v282 = vpow.pop %v281
    %v283 = vadd.f32 %v282, 1.0
    %v284 = vrcp.pop %v283
    %v285 = vmul.f32 %v283, %v284
    %v286 = vsub.f32 1.0, %v285
    %v287 = vmul.f32 %v284, %v286
    %v288 = vadd.f32 %v284, %v287
    %vm289 = vweird.f32 %v283
    %vm290 = vweird.f32 %v284
    %vm291 = vmor %vm289, %vm290
    %v292 = vsel %vm291, %v284, %v288
    %v293 = vand.u32 2147483647, %v283
    %vm294 = vcmp.eq.f32.partialorder %v293, 8.507059e+37
    %v295 = vand.u32 %v283, 2147483648
    %v296 = vor.u32 1.1754944e-38, %v295
    %v297 = vsel %vm294, %v296, %v292
    %v298 = vmul.f32 1.0, %v297
    %v299 = vtanh.pop %v279
    %v300 = vmul.f32 %v298, %v244
    %302 = vrot.lane.b32.xlu0 %v299, 64
    %v303 = vpop.permute.xlu0 %302
    %v305 = vmul.f32 %v298, %v303
    %307 = vrot.lane.b32.xlu0 %v305, 32
    %v308 = vpop.permute.xlu0 %307
    %v310 = vadd.f32 %v300, %v308
    %v311 = vtanh.pop %v310
    %313 = vrot.lane.b32.xlu0 %v311, 64
    %v314 = vpop.permute.xlu0 %313
    %v316 = vmul.f32 %v298, %v314
    %318 = vrot.lane.b32.xlu0 %v316, 32
    %v319 = vpop.permute.xlu0 %318
    %321 = vst.msk [vmem:[#allocation3 + $0x2] sm:$0x1] %vm188, %v319
    %v322 = vld [vmem:[#allocation2 + $0x3] sm:$0x1]
    %v323 = vsel %vm122, %v319, 0
    %325 = vmatpush.msra.mxu0 0.0
    %326 = vmatpush.msra.mxu0 0.0
    %327 = vmatpush.msra.mxu0 0.0
    %328 = vmatpush.msra.mxu0 0.0
    %329 = vmatpush.msra.mxu0 0.0
    %330 = vmatpush.msra.mxu0 0.0
    %331 = vmatpush.msra.mxu0 0.0
    %332 = vmatpush.msra.mxu0 0.0
    %333 = vmatpush.msra.mxu0 0.0
    %334 = vmatpush.msra.mxu0 0.0
    %335 = vmatpush.msra.mxu0 0.0
    %336 = vmatpush.msra.mxu0 0.0
    %337 = vmatpush.msra.mxu0 %v88
    %338 = vmatpush.msra.mxu0 %v87
    %339 = vmatpush.msra.mxu0 %v86
    %340 = vmatpush.msra.mxu0 %v85
    %341 = vmatmul.f32.gmra.mxu0 %v323
    %v342 = vpop.f32.mrf.mxu0
    %v343 = vadd.f32 0.0, %v342
    %344 = vdwg.mxu0
    %v345 = vadd.f32 %v322, %v343
    %v346 = vxor.u32 %v345, 2147483648
    %v347 = vmul.f32 %v346, 1.442695
    %v348 = vpow.pop %v347
    %v349 = vadd.f32 %v348, 1.0
    %v350 = vrcp.pop %v349
    %v351 = vmul.f32 %v349, %v350
    %v352 = vsub.f32 1.0, %v351
    %v353 = vmul.f32 %v350, %v352
    %v354 = vadd.f32 %v350, %v353
    %vm355 = vweird.f32 %v349
    %vm356 = vweird.f32 %v350
    %vm357 = vmor %vm355, %vm356
    %v358 = vsel %vm357, %v350, %v354
    %v359 = vand.u32 2147483647, %v349
    %vm360 = vcmp.eq.f32.partialorder %v359, 8.507059e+37
    %v361 = vand.u32 %v349, 2147483648
    %v362 = vor.u32 1.1754944e-38, %v361
    %v363 = vsel %vm360, %v362, %v358
    %v364 = vmul.f32 1.0, %v363
    %v365 = vtanh.pop %v345
    %v366 = vmul.f32 %v364, %v310
    %368 = vrot.lane.b32.xlu0 %v365, 64
    %v369 = vpop.permute.xlu0 %368
    %v371 = vmul.f32 %v364, %v369
    %373 = vrot.lane.b32.xlu0 %v371, 32
    %v374 = vpop.permute.xlu0 %373
    %v376 = vadd.f32 %v366, %v374
    %v377 = vtanh.pop %v376
    %379 = vrot.lane.b32.xlu0 %v377, 64
    %v380 = vpop.permute.xlu0 %379
    %v382 = vmul.f32 %v364, %v380
    %384 = vrot.lane.b32.xlu0 %v382, 32
    %v385 = vpop.permute.xlu0 %384
    %387 = vst.msk [vmem:[#allocation3 + $0x3] sm:$0x1] %vm188, %v385
    %v388 = vld [vmem:[#allocation2 + $0x4] sm:$0x1]
    %v389 = vsel %vm122, %v385, 0
    %391 = vmatpush.msra.mxu0 0.0
    %392 = vmatpush.msra.mxu0 0.0
    %393 = vmatpush.msra.mxu0 0.0
    %394 = vmatpush.msra.mxu0 0.0
    %395 = vmatpush.msra.mxu0 0.0
    %396 = vmatpush.msra.mxu0 0.0
    %397 = vmatpush.msra.mxu0 0.0
    %398 = vmatpush.msra.mxu0 0.0
    %399 = vmatpush.msra.mxu0 0.0
    %400 = vmatpush.msra.mxu0 0.0
    %401 = vmatpush.msra.mxu0 0.0
    %402 = vmatpush.msra.mxu0 0.0
    %403 = vmatpush.msra.mxu0 %v88
    %404 = vmatpush.msra.mxu0 %v87
    %405 = vmatpush.msra.mxu0 %v86
    %406 = vmatpush.msra.mxu0 %v85
    %407 = vmatmul.f32.gmra.mxu0 %v389
    %v408 = vpop.f32.mrf.mxu0
    %v409 = vadd.f32 0.0, %v408
    %410 = vdwg.mxu0
    %v411 = vadd.f32 %v388, %v409
    %v412 = vxor.u32 %v411, 2147483648
    %v413 = vmul.f32 %v412, 1.442695
    %v414 = vpow.pop %v413
    %v415 = vadd.f32 %v414, 1.0
    %v416 = vrcp.pop %v415
    %v417 = vmul.f32 %v415, %v416
    %v418 = vsub.f32 1.0, %v417
    %v419 = vmul.f32 %v416, %v418
    %v420 = vadd.f32 %v416, %v419
    %vm421 = vweird.f32 %v415
    %vm422 = vweird.f32 %v416
    %vm423 = vmor %vm421, %vm422
    %v424 = vsel %vm423, %v416, %v420
    %v425 = vand.u32 2147483647, %v415
    %vm426 = vcmp.eq.f32.partialorder %v425, 8.507059e+37
    %v427 = vand.u32 %v415, 2147483648
    %v428 = vor.u32 1.1754944e-38, %v427
    %v429 = vsel %vm426, %v428, %v424
    %v430 = vmul.f32 1.0, %v429
    %v431 = vtanh.pop %v411
    %v432 = vmul.f32 %v430, %v376
    %434 = vrot.lane.b32.xlu0 %v431, 64
    %v435 = vpop.permute.xlu0 %434
    %v437 = vmul.f32 %v430, %v435
    %439 = vrot.lane.b32.xlu0 %v437, 32
    %v440 = vpop.permute.xlu0 %439
    %v442 = vadd.f32 %v432, %v440
    %v443 = vtanh.pop %v442
    %445 = vrot.lane.b32.xlu0 %v443, 64
    %v446 = vpop.permute.xlu0 %445
    %v448 = vmul.f32 %v430, %v446
    %450 = vrot.lane.b32.xlu0 %v448, 32
    %v451 = vpop.permute.xlu0 %450
    %453 = vst.msk [vmem:[#allocation3 + $0x4] sm:$0x1] %vm188, %v451
    %v454 = vld [vmem:[#allocation2 + $0x5] sm:$0x1]
    %v455 = vsel %vm122, %v451, 0
    %457 = vmatpush.msra.mxu0 0.0
    %458 = vmatpush.msra.mxu0 0.0
    %459 = vmatpush.msra.mxu0 0.0
    %460 = vmatpush.msra.mxu0 0.0
    %461 = vmatpush.msra.mxu0 0.0
    %462 = vmatpush.msra.mxu0 0.0
    %463 = vmatpush.msra.mxu0 0.0
    %464 = vmatpush.msra.mxu0 0.0
    %465 = vmatpush.msra.mxu0 0.0
    %466 = vmatpush.msra.mxu0 0.0
    %467 = vmatpush.msra.mxu0 0.0
    %468 = vmatpush.msra.mxu0 0.0
    %469 = vmatpush.msra.mxu0 %v88
    %470 = vmatpush.msra.mxu0 %v87
    %471 = vmatpush.msra.mxu0 %v86
    %472 = vmatpush.msra.mxu0 %v85
    %473 = vmatmul.f32.gmra.mxu0 %v455
    %v474 = vpop.f32.mrf.mxu0
    %v475 = vadd.f32 0.0, %v474
    %476 = vdwg.mxu0
    %v477 = vadd.f32 %v454, %v475
    %v478 = vxor.u32 %v477, 2147483648
    %v479 = vmul.f32 %v478, 1.442695
    %v480 = vpow.pop %v479
    %v481 = vadd.f32 %v480, 1.0
    %v482 = vrcp.pop %v481
    %v483 = vmul.f32 %v481, %v482
    %v484 = vsub.f32 1.0, %v483
    %v485 = vmul.f32 %v482, %v484
    %v486 = vadd.f32 %v482, %v485
    %vm487 = vweird.f32 %v481
    %vm488 = vweird.f32 %v482
    %vm489 = vmor %vm487, %vm488
    %v490 = vsel %vm489, %v482, %v486
    %v491 = vand.u32 2147483647, %v481
    %vm492 = vcmp.eq.f32.partialorder %v491, 8.507059e+37
    %v493 = vand.u32 %v481, 2147483648
    %v494 = vor.u32 1.1754944e-38, %v493
    %v495 = vsel %vm492, %v494, %v490
    %v496 = vmul.f32 1.0, %v495
    %v497 = vtanh.pop %v477
    %v498 = vmul.f32 %v496, %v442
    %500 = vrot.lane.b32.xlu0 %v497, 64
    %v501 = vpop.permute.xlu0 %500
    %v503 = vmul.f32 %v496, %v501
    %505 = vrot.lane.b32.xlu0 %v503, 32
    %v506 = vpop.permute.xlu0 %505
    %v508 = vadd.f32 %v498, %v506
    %v509 = vtanh.pop %v508
    %511 = vrot.lane.b32.xlu0 %v509, 64
    %v512 = vpop.permute.xlu0 %511
    %v514 = vmul.f32 %v496, %v512
    %516 = vrot.lane.b32.xlu0 %v514, 32
    %v517 = vpop.permute.xlu0 %516
    %519 = vst.msk [vmem:[#allocation3 + $0x5] sm:$0x1] %vm188, %v517
    %v520 = vld [vmem:[#allocation2 + $0x6] sm:$0x1]
    %v521 = vsel %vm122, %v517, 0
    %523 = vmatpush.msra.mxu0 0.0
    %524 = vmatpush.msra.mxu0 0.0
    %525 = vmatpush.msra.mxu0 0.0
    %526 = vmatpush.msra.mxu0 0.0
    %527 = vmatpush.msra.mxu0 0.0
    %528 = vmatpush.msra.mxu0 0.0
    %529 = vmatpush.msra.mxu0 0.0
    %530 = vmatpush.msra.mxu0 0.0
    %531 = vmatpush.msra.mxu0 0.0
    %532 = vmatpush.msra.mxu0 0.0
    %533 = vmatpush.msra.mxu0 0.0
    %534 = vmatpush.msra.mxu0 0.0
    %535 = vmatpush.msra.mxu0 %v88
    %536 = vmatpush.msra.mxu0 %v87
    %537 = vmatpush.msra.mxu0 %v86
    %538 = vmatpush.msra.mxu0 %v85
    %539 = vmatmul.f32.gmra.mxu0 %v521
    %v540 = vpop.f32.mrf.mxu0
    %v541 = vadd.f32 0.0, %v540
    %542 = vdwg.mxu0
    %v543 = vadd.f32 %v520, %v541
    %v544 = vxor.u32 %v543, 2147483648
    %v545 = vmul.f32 %v544, 1.442695
    %v546 = vpow.pop %v545
    %v547 = vadd.f32 %v546, 1.0
    %v548 = vrcp.pop %v547
    %v549 = vmul.f32 %v547, %v548
    %v550 = vsub.f32 1.0, %v549
    %v551 = vmul.f32 %v548, %v550
    %v552 = vadd.f32 %v548, %v551
    %vm553 = vweird.f32 %v547
    %vm554 = vweird.f32 %v548
    %vm555 = vmor %vm553, %vm554
    %v556 = vsel %vm555, %v548, %v552
    %v557 = vand.u32 2147483647, %v547
    %vm558 = vcmp.eq.f32.partialorder %v557, 8.507059e+37
    %v559 = vand.u32 %v547, 2147483648
    %v560 = vor.u32 1.1754944e-38, %v559
    %v561 = vsel %vm558, %v560, %v556
    %v562 = vmul.f32 1.0, %v561
    %v563 = vtanh.pop %v543
    %v564 = vmul.f32 %v562, %v508
    %566 = vrot.lane.b32.xlu0 %v563, 64
    %v567 = vpop.permute.xlu0 %566
    %v569 = vmul.f32 %v562, %v567
    %571 = vrot.lane.b32.xlu0 %v569, 32
    %v572 = vpop.permute.xlu0 %571
    %v574 = vadd.f32 %v564, %v572
    %v575 = vtanh.pop %v574
    %577 = vrot.lane.b32.xlu0 %v575, 64
    %v578 = vpop.permute.xlu0 %577
    %v580 = vmul.f32 %v562, %v578
    %582 = vrot.lane.b32.xlu0 %v580, 32
    %v583 = vpop.permute.xlu0 %582
    %585 = vst.msk [vmem:[#allocation3 + $0x6] sm:$0x1] %vm188, %v583
    %v586 = vld [vmem:[#allocation2 + $0x7] sm:$0x1]
    %v587 = vsel %vm122, %v583, 0
    %589 = vmatpush.msra.mxu0 0.0
    %590 = vmatpush.msra.mxu0 0.0
    %591 = vmatpush.msra.mxu0 0.0
    %592 = vmatpush.msra.mxu0 0.0
    %593 = vmatpush.msra.mxu0 0.0
    %594 = vmatpush.msra.mxu0 0.0
    %595 = vmatpush.msra.mxu0 0.0
    %596 = vmatpush.msra.mxu0 0.0
    %597 = vmatpush.msra.mxu0 0.0
    %598 = vmatpush.msra.mxu0 0.0
    %599 = vmatpush.msra.mxu0 0.0
    %600 = vmatpush.msra.mxu0 0.0
    %601 = vmatpush.msra.mxu0 %v88
    %602 = vmatpush.msra.mxu0 %v87
    %603 = vmatpush.msra.mxu0 %v86
    %604 = vmatpush.msra.mxu0 %v85
    %605 = vmatmul.f32.gmra.mxu0 %v587
    %v606 = vpop.f32.mrf.mxu0
    %v607 = vadd.f32 0.0, %v606
    %608 = vdwg.mxu0
    %v609 = vadd.f32 %v586, %v607
    %v610 = vxor.u32 %v609, 2147483648
    %v611 = vmul.f32 %v610, 1.442695
    %v612 = vpow.pop %v611
    %v613 = vadd.f32 %v612, 1.0
    %v614 = vrcp.pop %v613
    %v615 = vmul.f32 %v613, %v614
    %v616 = vsub.f32 1.0, %v615
    %v617 = vmul.f32 %v614, %v616
    %v618 = vadd.f32 %v614, %v617
    %vm619 = vweird.f32 %v613
    %vm620 = vweird.f32 %v614
    %vm621 = vmor %vm619, %vm620
    %v622 = vsel %vm621, %v614, %v618
    %v623 = vand.u32 2147483647, %v613
    %vm624 = vcmp.eq.f32.partialorder %v623, 8.507059e+37
    %v625 = vand.u32 %v613, 2147483648
    %v626 = vor.u32 1.1754944e-38, %v625
    %v627 = vsel %vm624, %v626, %v622
    %v628 = vmul.f32 1.0, %v627
    %v629 = vtanh.pop %v609
    %v630 = vmul.f32 %v628, %v574
    %632 = vrot.lane.b32.xlu0 %v629, 64
    %v633 = vpop.permute.xlu0 %632
    %v635 = vmul.f32 %v628, %v633
    %637 = vrot.lane.b32.xlu0 %v635, 32
    %v638 = vpop.permute.xlu0 %637
    %v640 = vadd.f32 %v630, %v638
    %v641 = vtanh.pop %v640
    %643 = vrot.lane.b32.xlu0 %v641, 64
    %v644 = vpop.permute.xlu0 %643
    %v646 = vmul.f32 %v628, %v644
    %648 = vrot.lane.b32.xlu0 %v646, 32
    %v649 = vpop.permute.xlu0 %648
    %651 = vst.msk [vmem:[#allocation3 + $0x7] sm:$0x1] %vm188, %v649
    %v652 = vld [vmem:[#allocation3] sm:$0xff]
    %v653 = vld [vmem:[#allocation10] sm:$0xff]
    %v654 = vld [vmem:[#allocation10 + $0x8] sm:$0xff]
    %v655 = vld [vmem:[#allocation10 + $0x10] sm:$0xff]
    %v656 = vld [vmem:[#allocation10 + $0x18] sm:$0xff]
    %v657 = vld [vmem:[%s5] sm:$0x1]
    %v659 = vperm.slane %v657, 0
    %v662 = vsel %vm122, %v652, 0
    %664 = vmatpush.msra.mxu0 0.0
    %665 = vmatpush.msra.mxu0 0.0
    %666 = vmatpush.msra.mxu0 0.0
    %667 = vmatpush.msra.mxu0 0.0
    %668 = vmatpush.msra.mxu0 0.0
    %669 = vmatpush.msra.mxu0 0.0
    %670 = vmatpush.msra.mxu0 0.0
    %671 = vmatpush.msra.mxu0 0.0
    %672 = vmatpush.msra.mxu0 0.0
    %673 = vmatpush.msra.mxu0 0.0
    %674 = vmatpush.msra.mxu0 0.0
    %675 = vmatpush.msra.mxu0 0.0
    %676 = vmatpush.msra.mxu0 %v656
    %677 = vmatpush.msra.mxu0 %v655
    %678 = vmatpush.msra.mxu0 %v654
    %679 = vmatpush.msra.mxu0 %v653
    %680 = vmatmul.f32.gmra.mxu0 %v662
    %v681 = vpop.f32.mrf.mxu0
    %v682 = vadd.f32 %v659, %v681
    %683 = vdwg.mxu0
    %684 = vst [vmem:[#allocation12] sm:$0xff] %v682
    // Predicated region
    $region42: #{tpu_custom_call.1} parent=1 // pred_check
      _
    $region43: #{tpu_custom_call.1} parent=1 // pred_check_branch
      %686 = sbr.rel (0) target = $region45
    $region44: #{tpu_custom_call.1} parent=1 // pred_region
      %688 = vsyncadd [#allocation6], 0
      %s690 = sshll.u32 [#allocation12], 4
      %s691 = int_to_ptr.vmem [resolvable:$true] %s690
      %s692 = sshll.u32 %s6, 4
      %s693 = int_to_ptr.hbm [resolvable:$true] %s692
      %695 = dma.vmem_to_hbm [thread:$0]  %s691, 128, %s693, [#allocation6]
    $region45: #{tpu_custom_call.1} parent=1 // pred_fallthru
      _
    // Predicated region
    $region46: #{tpu_custom_call.1} parent=1 // pred_check
      _
    $region47: #{tpu_custom_call.1} parent=1 // pred_check_branch
      %697 = sbr.rel (0) target = $region49
    $region48: #{tpu_custom_call.1} parent=1 // pred_region
      %699 = dma.done [#allocation6], 128
    $region49: #{tpu_custom_call.1} parent=1 // pred_fallthru
      _
    %700 = vsyncpa [#allocation5], 1
    %701 = vsyncpa [#allocation8], 1
    %702 = vsyncpa [#allocation11], 1
    %703 = vsyncpa [#allocation6], 1

</llo_original>
